<compile_context>
chip_gen: v7x
topology: tpu7x:2x2x1
jax: 0.10.0
libtpu: 0.0.40
codegen_flags: <defaults>
</compile_context>

<pallas_src>
import functools

import jax
import jax.numpy as jnp
from jax import lax
from jax.experimental import pallas as pl
from jax.experimental.pallas import tpu as pltpu


def _lstm_kernel(xf_ref, len_ref, wih_ref, whh_ref, b_ref, h_out_ref):
    TB, H_in = xf_ref.shape
    H = whh_ref.shape[0]
    Bp = len_ref.shape[0]
    T = TB // Bp

    # ---- batched input projection for ALL timesteps (one MXU matmul) --------
    # xf is already (T*Bp, H_in) (flattened wrapper-side); result stays a value.
    xproj = (jnp.dot(xf_ref[...], wih_ref[...],
                     preferred_element_type=jnp.float32)
             + b_ref[...])                                   # (T*Bp, 4H)

    # Lane-broadcast lengths once, outside the recurrence.
    lengths = jnp.broadcast_to(len_ref[...], (Bp, H))        # (Bp, H) int32
    whh = whh_ref[...]                                       # (H, 4H), resident

    h = jnp.zeros((Bp, H), jnp.float32)
    c = jnp.zeros((Bp, H), jnp.float32)

    # Statically unrolled recurrence (T is small & static); only h @ W_hh is on
    # the serial critical path.
    for t in range(T):
        gates = (xproj[t * Bp:(t + 1) * Bp, :]
                 + jnp.dot(h, whh, preferred_element_type=jnp.float32))
        # Single full-width sigmoid (one EUP push). PyTorch gate order [i,f,g,o];
        # the g-gate columns of W/b were pre-scaled by 2 in the wrapper so
        # tanh(z) = 2*sigmoid(2z) - 1 recovers g with two VALU ops.
        sig = jax.nn.sigmoid(gates)
        i_g = sig[:, 0 * H:1 * H]
        f_g = sig[:, 1 * H:2 * H]
        g_g = 2.0 * sig[:, 2 * H:3 * H] - 1.0
        o_g = sig[:, 3 * H:4 * H]

        c_new = f_g * c + i_g * g_g
        h_new = o_g * jnp.tanh(c_new)

        valid = t < lengths                                  # (Bp, H) bool
        h = jnp.where(valid, h_new, h)
        c = jnp.where(valid, c_new, c)

    h_out_ref[...] = h.astype(h_out_ref.dtype)


@functools.partial(jax.jit, static_argnames=())
def lstm_pallas(x, lengths, w_ih, w_hh, b_ih, b_hh):
    """x: (T, B, H_in) f32; lengths: (B,) int32.
    w_ih: (4H, H_in), w_hh: (4H, H), b_ih/b_hh: (4H,)  (PyTorch layout).
    Returns (B, H) final hidden state per sequence (== ho[-1])."""
    T, B, H_in = x.shape
    H = w_hh.shape[1]

    # Pad batch to a sublane multiple (>= 8); pad rows get length 0 -> stay 0.
    Bp = max(8, ((B + 7) // 8) * 8)
    x = jnp.asarray(x, jnp.float32)
    lengths = jnp.asarray(lengths, jnp.int32)
    if Bp != B:
        x = jnp.pad(x, ((0, 0), (0, Bp - B), (0, 0)))
        lengths = jnp.pad(lengths, (0, Bp - B))

    # Flatten wrapper-side so the kernel never reshapes a Ref-loaded value.
    xf = x.reshape(T * Bp, H_in)
    lengths_col = lengths[:, None]                           # (Bp, 1)

    # Pre-transpose weights so the kernel does x @ W (MXU-friendly), fold the
    # two biases, and pre-scale the g-gate block by 2 for the sigmoid-only
    # gate nonlinearity (tanh(z) = 2*sigmoid(2z) - 1).
    w_ih_t = jnp.asarray(w_ih, jnp.float32).T                # (H_in, 4H)
    w_hh_t = jnp.asarray(w_hh, jnp.float32).T                # (H,    4H)
    b = (jnp.asarray(b_ih, jnp.float32)
         + jnp.asarray(b_hh, jnp.float32)).reshape(1, 4 * H)
    gate_scale = jnp.concatenate(
        [jnp.ones((1, 2 * H), jnp.float32),
         jnp.full((1, H), 2.0, jnp.float32),
         jnp.ones((1, H), jnp.float32)], axis=1)             # (1, 4H)
    w_ih_t = w_ih_t * gate_scale
    w_hh_t = w_hh_t * gate_scale
    b = b * gate_scale

    h = pl.pallas_call(
        _lstm_kernel,
        out_shape=jax.ShapeDtypeStruct((Bp, H), jnp.float32),
        in_specs=[pl.BlockSpec(memory_space=pltpu.MemorySpace.VMEM)] * 5,
        out_specs=pl.BlockSpec(memory_space=pltpu.MemorySpace.VMEM),
    )(xf, lengths_col, w_ih_t, w_hh_t, b)

    return h[:B]


def lstm_ref(x, lengths, w_ih, w_hh, b_ih, b_hh):
    """Pure-JAX reference of the same semantics (for verification)."""
    T, B, _ = x.shape
    H = w_hh.shape[1]

    mask = (jnp.arange(T)[:, None] < lengths[None, :])[:, :, None]  # (T,B,1)

    def step(carry, inp):
        h, c = carry
        x_t, m = inp
        gates = x_t @ w_ih.T + h @ w_hh.T + b_ih + b_hh
        i, f, g, o = jnp.split(gates, 4, axis=-1)
        i = jax.nn.sigmoid(i)
        f = jax.nn.sigmoid(f)
        g = jnp.tanh(g)
        o = jax.nn.sigmoid(o)
        c_new = f * c + i * g
        h_new = o * jnp.tanh(c_new)
        h = jnp.where(m, h_new, h)
        c = jnp.where(m, c_new, c)
        return (h, c), None

    init = (jnp.zeros((B, H), jnp.float32), jnp.zeros((B, H), jnp.float32))
    (h, _c), _ = lax.scan(step, init, (x, mask))
    return h


if __name__ == "__main__":
    # Module config: LSTM(hidden_size=32, output_size=32, n_layers=1)
    T, B = 8, 2            # seq_len, batch (batch_first=False -> (T, B, H_in))
    H_IN, H_OUT = 32, 32   # hidden_size (input dim), output_size (LSTM hidden)

    key = jax.random.PRNGKey(0)
    kx, k1, k2, k3, k4 = jax.random.split(key, 5)

    x = jax.random.normal(kx, (T, B, H_IN), dtype=jnp.float32)
    input_lengths = jnp.array([T, 5], dtype=jnp.int32)  # padded sequence lengths

    # Deterministic parameter init, PyTorch-style uniform(-1/sqrt(H), 1/sqrt(H)).
    bound = 1.0 / (H_OUT ** 0.5)
    w_ih = jax.random.uniform(k1, (4 * H_OUT, H_IN), jnp.float32, -bound, bound)
    w_hh = jax.random.uniform(k2, (4 * H_OUT, H_OUT), jnp.float32, -bound, bound)
    b_ih = jax.random.uniform(k3, (4 * H_OUT,), jnp.float32, -bound, bound)
    b_hh = jax.random.uniform(k4, (4 * H_OUT,), jnp.float32, -bound, bound)

    h_last = lstm_pallas(x, input_lengths, w_ih, w_hh, b_ih, b_hh)
    h_last = jax.block_until_ready(h_last)

    h_ref = jax.block_until_ready(
        lstm_ref(x, input_lengths, w_ih, w_hh, b_ih, b_hh))

    assert h_last.shape == (B, H_OUT)
    assert jnp.allclose(h_last, h_ref, atol=1e-5, rtol=1e-5), "mismatch vs reference"

    print("KERNEL_OK")
</pallas_src>

<mosaic_0001>
module attributes {stable_mosaic.version = 11 : i64} {
  func.func @_lstm_kernel(%arg0: memref<64x32xf32, #tpu.memory_space<vmem>>, %arg1: memref<8x1xi32, #tpu.memory_space<vmem>>, %arg2: memref<32x128xf32, #tpu.memory_space<vmem>>, %arg3: memref<32x128xf32, #tpu.memory_space<vmem>>, %arg4: memref<1x128xf32, #tpu.memory_space<vmem>>, %arg5: memref<8x32xf32, #tpu.memory_space<vmem>>) attributes {dimension_semantics = [], scalar_prefetch = 0 : i64, scratch_operands = 0 : i64, tpu.core_type = #tpu.core_type<tc>} {
    %c0 = arith.constant 0 : index
    %c0_0 = arith.constant 0 : index
    %0 = vector.load %arg0[%c0, %c0_0] : memref<64x32xf32, #tpu.memory_space<vmem>>, vector<64x32xf32>
    %c0_1 = arith.constant 0 : index
    %c0_2 = arith.constant 0 : index
    %1 = vector.load %arg2[%c0_1, %c0_2] : memref<32x128xf32, #tpu.memory_space<vmem>>, vector<32x128xf32>
    %cst = arith.constant dense<0.000000e+00> : vector<64x128xf32>
    %2 = tpu.matmul %0, %1, %cst {dimension_numbers = #tpu.dot_dimension_numbers<[1], [0], [0], [1], [0, 0, 1, 1], [], []>} : vector<64x32xf32>, vector<32x128xf32>, vector<64x128xf32> -> vector<64x128xf32>
    %c0_3 = arith.constant 0 : index
    %c0_4 = arith.constant 0 : index
    %3 = vector.load %arg4[%c0_3, %c0_4] : memref<1x128xf32, #tpu.memory_space<vmem>>, vector<1x128xf32>
    %4 = vector.broadcast %3 : vector<1x128xf32> to vector<64x128xf32>
    %5 = arith.addf %2, %4 : vector<64x128xf32>
    %c0_5 = arith.constant 0 : index
    %c0_6 = arith.constant 0 : index
    %6 = vector.load %arg1[%c0_5, %c0_6] : memref<8x1xi32, #tpu.memory_space<vmem>>, vector<8x1xi32>
    %7 = vector.shape_cast %6 : vector<8x1xi32> to vector<8x1xi32>
    %8 = vector.broadcast %7 : vector<8x1xi32> to vector<8x32xi32>
    %c0_7 = arith.constant 0 : index
    %c0_8 = arith.constant 0 : index
    %9 = vector.load %arg3[%c0_7, %c0_8] : memref<32x128xf32, #tpu.memory_space<vmem>>, vector<32x128xf32>
    %cst_9 = arith.constant 0.000000e+00 : f32
    %10 = vector.broadcast %cst_9 : f32 to vector<8x32xf32>
    %cst_10 = arith.constant 0.000000e+00 : f32
    %11 = vector.broadcast %cst_10 : f32 to vector<8x32xf32>
    %12 = vector.extract_strided_slice %5 {offsets = [0, 0], sizes = [8, 128], strides = [1, 1]} : vector<64x128xf32> to vector<8x128xf32>
    %cst_11 = arith.constant dense<0.000000e+00> : vector<8x128xf32>
    %13 = tpu.matmul %10, %9, %cst_11 {dimension_numbers = #tpu.dot_dimension_numbers<[1], [0], [0], [1], [0, 0, 1, 1], [], []>} : vector<8x32xf32>, vector<32x128xf32>, vector<8x128xf32> -> vector<8x128xf32>
    %14 = arith.addf %12, %13 : vector<8x128xf32>
    %15 = arith.negf %14 : vector<8x128xf32>
    %16 = math.exp %15 : vector<8x128xf32>
    %cst_12 = arith.constant 1.000000e+00 : f32
    %17 = vector.broadcast %cst_12 : f32 to vector<8x128xf32>
    %18 = arith.addf %17, %16 : vector<8x128xf32>
    %19 = arith.divf %17, %18 : vector<8x128xf32>
    %20 = vector.extract_strided_slice %19 {offsets = [0, 0], sizes = [8, 32], strides = [1, 1]} : vector<8x128xf32> to vector<8x32xf32>
    %21 = vector.extract_strided_slice %19 {offsets = [0, 32], sizes = [8, 32], strides = [1, 1]} : vector<8x128xf32> to vector<8x32xf32>
    %22 = vector.extract_strided_slice %19 {offsets = [0, 64], sizes = [8, 32], strides = [1, 1]} : vector<8x128xf32> to vector<8x32xf32>
    %cst_13 = arith.constant 2.000000e+00 : f32
    %23 = vector.broadcast %cst_13 : f32 to vector<8x32xf32>
    %24 = arith.mulf %23, %22 : vector<8x32xf32>
    %cst_14 = arith.constant 1.000000e+00 : f32
    %25 = vector.broadcast %cst_14 : f32 to vector<8x32xf32>
    %26 = arith.subf %24, %25 : vector<8x32xf32>
    %27 = vector.extract_strided_slice %19 {offsets = [0, 96], sizes = [8, 32], strides = [1, 1]} : vector<8x128xf32> to vector<8x32xf32>
    %28 = arith.mulf %21, %11 : vector<8x32xf32>
    %29 = arith.mulf %20, %26 : vector<8x32xf32>
    %30 = arith.addf %28, %29 : vector<8x32xf32>
    %31 = math.tanh %30 : vector<8x32xf32>
    %32 = arith.mulf %27, %31 : vector<8x32xf32>
    %c0_i32 = arith.constant 0 : i32
    %33 = vector.broadcast %c0_i32 : i32 to vector<8x32xi32>
    %34 = arith.cmpi sgt, %8, %33 : vector<8x32xi32>
    %35 = arith.select %34, %32, %10 : vector<8x32xi1>, vector<8x32xf32>
    %36 = arith.select %34, %30, %11 : vector<8x32xi1>, vector<8x32xf32>
    %37 = vector.extract_strided_slice %5 {offsets = [8, 0], sizes = [8, 128], strides = [1, 1]} : vector<64x128xf32> to vector<8x128xf32>
    %cst_15 = arith.constant dense<0.000000e+00> : vector<8x128xf32>
    %38 = tpu.matmul %35, %9, %cst_15 {dimension_numbers = #tpu.dot_dimension_numbers<[1], [0], [0], [1], [0, 0, 1, 1], [], []>} : vector<8x32xf32>, vector<32x128xf32>, vector<8x128xf32> -> vector<8x128xf32>
    %39 = arith.addf %37, %38 : vector<8x128xf32>
    %40 = arith.negf %39 : vector<8x128xf32>
    %41 = math.exp %40 : vector<8x128xf32>
    %cst_16 = arith.constant 1.000000e+00 : f32
    %42 = vector.broadcast %cst_16 : f32 to vector<8x128xf32>
    %43 = arith.addf %42, %41 : vector<8x128xf32>
    %44 = arith.divf %42, %43 : vector<8x128xf32>
    %45 = vector.extract_strided_slice %44 {offsets = [0, 0], sizes = [8, 32], strides = [1, 1]} : vector<8x128xf32> to vector<8x32xf32>
    %46 = vector.extract_strided_slice %44 {offsets = [0, 32], sizes = [8, 32], strides = [1, 1]} : vector<8x128xf32> to vector<8x32xf32>
    %47 = vector.extract_strided_slice %44 {offsets = [0, 64], sizes = [8, 32], strides = [1, 1]} : vector<8x128xf32> to vector<8x32xf32>
    %cst_17 = arith.constant 2.000000e+00 : f32
    %48 = vector.broadcast %cst_17 : f32 to vector<8x32xf32>
    %49 = arith.mulf %48, %47 : vector<8x32xf32>
    %cst_18 = arith.constant 1.000000e+00 : f32
    %50 = vector.broadcast %cst_18 : f32 to vector<8x32xf32>
    %51 = arith.subf %49, %50 : vector<8x32xf32>
    %52 = vector.extract_strided_slice %44 {offsets = [0, 96], sizes = [8, 32], strides = [1, 1]} : vector<8x128xf32> to vector<8x32xf32>
    %53 = arith.mulf %46, %36 : vector<8x32xf32>
    %54 = arith.mulf %45, %51 : vector<8x32xf32>
    %55 = arith.addf %53, %54 : vector<8x32xf32>
    %56 = math.tanh %55 : vector<8x32xf32>
    %57 = arith.mulf %52, %56 : vector<8x32xf32>
    %c1_i32 = arith.constant 1 : i32
    %58 = vector.broadcast %c1_i32 : i32 to vector<8x32xi32>
    %59 = arith.cmpi sgt, %8, %58 : vector<8x32xi32>
    %60 = arith.select %59, %57, %35 : vector<8x32xi1>, vector<8x32xf32>
    %61 = arith.select %59, %55, %36 : vector<8x32xi1>, vector<8x32xf32>
    %62 = vector.extract_strided_slice %5 {offsets = [16, 0], sizes = [8, 128], strides = [1, 1]} : vector<64x128xf32> to vector<8x128xf32>
    %cst_19 = arith.constant dense<0.000000e+00> : vector<8x128xf32>
    %63 = tpu.matmul %60, %9, %cst_19 {dimension_numbers = #tpu.dot_dimension_numbers<[1], [0], [0], [1], [0, 0, 1, 1], [], []>} : vector<8x32xf32>, vector<32x128xf32>, vector<8x128xf32> -> vector<8x128xf32>
    %64 = arith.addf %62, %63 : vector<8x128xf32>
    %65 = arith.negf %64 : vector<8x128xf32>
    %66 = math.exp %65 : vector<8x128xf32>
    %cst_20 = arith.constant 1.000000e+00 : f32
    %67 = vector.broadcast %cst_20 : f32 to vector<8x128xf32>
    %68 = arith.addf %67, %66 : vector<8x128xf32>
    %69 = arith.divf %67, %68 : vector<8x128xf32>
    %70 = vector.extract_strided_slice %69 {offsets = [0, 0], sizes = [8, 32], strides = [1, 1]} : vector<8x128xf32> to vector<8x32xf32>
    %71 = vector.extract_strided_slice %69 {offsets = [0, 32], sizes = [8, 32], strides = [1, 1]} : vector<8x128xf32> to vector<8x32xf32>
    %72 = vector.extract_strided_slice %69 {offsets = [0, 64], sizes = [8, 32], strides = [1, 1]} : vector<8x128xf32> to vector<8x32xf32>
    %cst_21 = arith.constant 2.000000e+00 : f32
    %73 = vector.broadcast %cst_21 : f32 to vector<8x32xf32>
    %74 = arith.mulf %73, %72 : vector<8x32xf32>
    %cst_22 = arith.constant 1.000000e+00 : f32
    %75 = vector.broadcast %cst_22 : f32 to vector<8x32xf32>
    %76 = arith.subf %74, %75 : vector<8x32xf32>
    %77 = vector.extract_strided_slice %69 {offsets = [0, 96], sizes = [8, 32], strides = [1, 1]} : vector<8x128xf32> to vector<8x32xf32>
    %78 = arith.mulf %71, %61 : vector<8x32xf32>
    %79 = arith.mulf %70, %76 : vector<8x32xf32>
    %80 = arith.addf %78, %79 : vector<8x32xf32>
    %81 = math.tanh %80 : vector<8x32xf32>
    %82 = arith.mulf %77, %81 : vector<8x32xf32>
    %c2_i32 = arith.constant 2 : i32
    %83 = vector.broadcast %c2_i32 : i32 to vector<8x32xi32>
    %84 = arith.cmpi sgt, %8, %83 : vector<8x32xi32>
    %85 = arith.select %84, %82, %60 : vector<8x32xi1>, vector<8x32xf32>
    %86 = arith.select %84, %80, %61 : vector<8x32xi1>, vector<8x32xf32>
    %87 = vector.extract_strided_slice %5 {offsets = [24, 0], sizes = [8, 128], strides = [1, 1]} : vector<64x128xf32> to vector<8x128xf32>
    %cst_23 = arith.constant dense<0.000000e+00> : vector<8x128xf32>
    %88 = tpu.matmul %85, %9, %cst_23 {dimension_numbers = #tpu.dot_dimension_numbers<[1], [0], [0], [1], [0, 0, 1, 1], [], []>} : vector<8x32xf32>, vector<32x128xf32>, vector<8x128xf32> -> vector<8x128xf32>
    %89 = arith.addf %87, %88 : vector<8x128xf32>
    %90 = arith.negf %89 : vector<8x128xf32>
    %91 = math.exp %90 : vector<8x128xf32>
    %cst_24 = arith.constant 1.000000e+00 : f32
    %92 = vector.broadcast %cst_24 : f32 to vector<8x128xf32>
    %93 = arith.addf %92, %91 : vector<8x128xf32>
    %94 = arith.divf %92, %93 : vector<8x128xf32>
    %95 = vector.extract_strided_slice %94 {offsets = [0, 0], sizes = [8, 32], strides = [1, 1]} : vector<8x128xf32> to vector<8x32xf32>
    %96 = vector.extract_strided_slice %94 {offsets = [0, 32], sizes = [8, 32], strides = [1, 1]} : vector<8x128xf32> to vector<8x32xf32>
    %97 = vector.extract_strided_slice %94 {offsets = [0, 64], sizes = [8, 32], strides = [1, 1]} : vector<8x128xf32> to vector<8x32xf32>
    %cst_25 = arith.constant 2.000000e+00 : f32
    %98 = vector.broadcast %cst_25 : f32 to vector<8x32xf32>
    %99 = arith.mulf %98, %97 : vector<8x32xf32>
    %cst_26 = arith.constant 1.000000e+00 : f32
    %100 = vector.broadcast %cst_26 : f32 to vector<8x32xf32>
    %101 = arith.subf %99, %100 : vector<8x32xf32>
    %102 = vector.extract_strided_slice %94 {offsets = [0, 96], sizes = [8, 32], strides = [1, 1]} : vector<8x128xf32> to vector<8x32xf32>
    %103 = arith.mulf %96, %86 : vector<8x32xf32>
    %104 = arith.mulf %95, %101 : vector<8x32xf32>
    %105 = arith.addf %103, %104 : vector<8x32xf32>
    %106 = math.tanh %105 : vector<8x32xf32>
    %107 = arith.mulf %102, %106 : vector<8x32xf32>
    %c3_i32 = arith.constant 3 : i32
    %108 = vector.broadcast %c3_i32 : i32 to vector<8x32xi32>
    %109 = arith.cmpi sgt, %8, %108 : vector<8x32xi32>
    %110 = arith.select %109, %107, %85 : vector<8x32xi1>, vector<8x32xf32>
    %111 = arith.select %109, %105, %86 : vector<8x32xi1>, vector<8x32xf32>
    %112 = vector.extract_strided_slice %5 {offsets = [32, 0], sizes = [8, 128], strides = [1, 1]} : vector<64x128xf32> to vector<8x128xf32>
    %cst_27 = arith.constant dense<0.000000e+00> : vector<8x128xf32>
    %113 = tpu.matmul %110, %9, %cst_27 {dimension_numbers = #tpu.dot_dimension_numbers<[1], [0], [0], [1], [0, 0, 1, 1], [], []>} : vector<8x32xf32>, vector<32x128xf32>, vector<8x128xf32> -> vector<8x128xf32>
    %114 = arith.addf %112, %113 : vector<8x128xf32>
    %115 = arith.negf %114 : vector<8x128xf32>
    %116 = math.exp %115 : vector<8x128xf32>
    %cst_28 = arith.constant 1.000000e+00 : f32
    %117 = vector.broadcast %cst_28 : f32 to vector<8x128xf32>
    %118 = arith.addf %117, %116 : vector<8x128xf32>
    %119 = arith.divf %117, %118 : vector<8x128xf32>
    %120 = vector.extract_strided_slice %119 {offsets = [0, 0], sizes = [8, 32], strides = [1, 1]} : vector<8x128xf32> to vector<8x32xf32>
    %121 = vector.extract_strided_slice %119 {offsets = [0, 32], sizes = [8, 32], strides = [1, 1]} : vector<8x128xf32> to vector<8x32xf32>
    %122 = vector.extract_strided_slice %119 {offsets = [0, 64], sizes = [8, 32], strides = [1, 1]} : vector<8x128xf32> to vector<8x32xf32>
    %cst_29 = arith.constant 2.000000e+00 : f32
    %123 = vector.broadcast %cst_29 : f32 to vector<8x32xf32>
    %124 = arith.mulf %123, %122 : vector<8x32xf32>
    %cst_30 = arith.constant 1.000000e+00 : f32
    %125 = vector.broadcast %cst_30 : f32 to vector<8x32xf32>
    %126 = arith.subf %124, %125 : vector<8x32xf32>
    %127 = vector.extract_strided_slice %119 {offsets = [0, 96], sizes = [8, 32], strides = [1, 1]} : vector<8x128xf32> to vector<8x32xf32>
    %128 = arith.mulf %121, %111 : vector<8x32xf32>
    %129 = arith.mulf %120, %126 : vector<8x32xf32>
    %130 = arith.addf %128, %129 : vector<8x32xf32>
    %131 = math.tanh %130 : vector<8x32xf32>
    %132 = arith.mulf %127, %131 : vector<8x32xf32>
    %c4_i32 = arith.constant 4 : i32
    %133 = vector.broadcast %c4_i32 : i32 to vector<8x32xi32>
    %134 = arith.cmpi sgt, %8, %133 : vector<8x32xi32>
    %135 = arith.select %134, %132, %110 : vector<8x32xi1>, vector<8x32xf32>
    %136 = arith.select %134, %130, %111 : vector<8x32xi1>, vector<8x32xf32>
    %137 = vector.extract_strided_slice %5 {offsets = [40, 0], sizes = [8, 128], strides = [1, 1]} : vector<64x128xf32> to vector<8x128xf32>
    %cst_31 = arith.constant dense<0.000000e+00> : vector<8x128xf32>
    %138 = tpu.matmul %135, %9, %cst_31 {dimension_numbers = #tpu.dot_dimension_numbers<[1], [0], [0], [1], [0, 0, 1, 1], [], []>} : vector<8x32xf32>, vector<32x128xf32>, vector<8x128xf32> -> vector<8x128xf32>
    %139 = arith.addf %137, %138 : vector<8x128xf32>
    %140 = arith.negf %139 : vector<8x128xf32>
    %141 = math.exp %140 : vector<8x128xf32>
    %cst_32 = arith.constant 1.000000e+00 : f32
    %142 = vector.broadcast %cst_32 : f32 to vector<8x128xf32>
    %143 = arith.addf %142, %141 : vector<8x128xf32>
    %144 = arith.divf %142, %143 : vector<8x128xf32>
    %145 = vector.extract_strided_slice %144 {offsets = [0, 0], sizes = [8, 32], strides = [1, 1]} : vector<8x128xf32> to vector<8x32xf32>
    %146 = vector.extract_strided_slice %144 {offsets = [0, 32], sizes = [8, 32], strides = [1, 1]} : vector<8x128xf32> to vector<8x32xf32>
    %147 = vector.extract_strided_slice %144 {offsets = [0, 64], sizes = [8, 32], strides = [1, 1]} : vector<8x128xf32> to vector<8x32xf32>
    %cst_33 = arith.constant 2.000000e+00 : f32
    %148 = vector.broadcast %cst_33 : f32 to vector<8x32xf32>
    %149 = arith.mulf %148, %147 : vector<8x32xf32>
    %cst_34 = arith.constant 1.000000e+00 : f32
    %150 = vector.broadcast %cst_34 : f32 to vector<8x32xf32>
    %151 = arith.subf %149, %150 : vector<8x32xf32>
    %152 = vector.extract_strided_slice %144 {offsets = [0, 96], sizes = [8, 32], strides = [1, 1]} : vector<8x128xf32> to vector<8x32xf32>
    %153 = arith.mulf %146, %136 : vector<8x32xf32>
    %154 = arith.mulf %145, %151 : vector<8x32xf32>
    %155 = arith.addf %153, %154 : vector<8x32xf32>
    %156 = math.tanh %155 : vector<8x32xf32>
    %157 = arith.mulf %152, %156 : vector<8x32xf32>
    %c5_i32 = arith.constant 5 : i32
    %158 = vector.broadcast %c5_i32 : i32 to vector<8x32xi32>
    %159 = arith.cmpi sgt, %8, %158 : vector<8x32xi32>
    %160 = arith.select %159, %157, %135 : vector<8x32xi1>, vector<8x32xf32>
    %161 = arith.select %159, %155, %136 : vector<8x32xi1>, vector<8x32xf32>
    %162 = vector.extract_strided_slice %5 {offsets = [48, 0], sizes = [8, 128], strides = [1, 1]} : vector<64x128xf32> to vector<8x128xf32>
    %cst_35 = arith.constant dense<0.000000e+00> : vector<8x128xf32>
    %163 = tpu.matmul %160, %9, %cst_35 {dimension_numbers = #tpu.dot_dimension_numbers<[1], [0], [0], [1], [0, 0, 1, 1], [], []>} : vector<8x32xf32>, vector<32x128xf32>, vector<8x128xf32> -> vector<8x128xf32>
    %164 = arith.addf %162, %163 : vector<8x128xf32>
    %165 = arith.negf %164 : vector<8x128xf32>
    %166 = math.exp %165 : vector<8x128xf32>
    %cst_36 = arith.constant 1.000000e+00 : f32
    %167 = vector.broadcast %cst_36 : f32 to vector<8x128xf32>
    %168 = arith.addf %167, %166 : vector<8x128xf32>
    %169 = arith.divf %167, %168 : vector<8x128xf32>
    %170 = vector.extract_strided_slice %169 {offsets = [0, 0], sizes = [8, 32], strides = [1, 1]} : vector<8x128xf32> to vector<8x32xf32>
    %171 = vector.extract_strided_slice %169 {offsets = [0, 32], sizes = [8, 32], strides = [1, 1]} : vector<8x128xf32> to vector<8x32xf32>
    %172 = vector.extract_strided_slice %169 {offsets = [0, 64], sizes = [8, 32], strides = [1, 1]} : vector<8x128xf32> to vector<8x32xf32>
    %cst_37 = arith.constant 2.000000e+00 : f32
    %173 = vector.broadcast %cst_37 : f32 to vector<8x32xf32>
    %174 = arith.mulf %173, %172 : vector<8x32xf32>
    %cst_38 = arith.constant 1.000000e+00 : f32
    %175 = vector.broadcast %cst_38 : f32 to vector<8x32xf32>
    %176 = arith.subf %174, %175 : vector<8x32xf32>
    %177 = vector.extract_strided_slice %169 {offsets = [0, 96], sizes = [8, 32], strides = [1, 1]} : vector<8x128xf32> to vector<8x32xf32>
    %178 = arith.mulf %171, %161 : vector<8x32xf32>
    %179 = arith.mulf %170, %176 : vector<8x32xf32>
    %180 = arith.addf %178, %179 : vector<8x32xf32>
    %181 = math.tanh %180 : vector<8x32xf32>
    %182 = arith.mulf %177, %181 : vector<8x32xf32>
    %c6_i32 = arith.constant 6 : i32
    %183 = vector.broadcast %c6_i32 : i32 to vector<8x32xi32>
    %184 = arith.cmpi sgt, %8, %183 : vector<8x32xi32>
    %185 = arith.select %184, %182, %160 : vector<8x32xi1>, vector<8x32xf32>
    %186 = arith.select %184, %180, %161 : vector<8x32xi1>, vector<8x32xf32>
    %187 = vector.extract_strided_slice %5 {offsets = [56, 0], sizes = [8, 128], strides = [1, 1]} : vector<64x128xf32> to vector<8x128xf32>
    %cst_39 = arith.constant dense<0.000000e+00> : vector<8x128xf32>
    %188 = tpu.matmul %185, %9, %cst_39 {dimension_numbers = #tpu.dot_dimension_numbers<[1], [0], [0], [1], [0, 0, 1, 1], [], []>} : vector<8x32xf32>, vector<32x128xf32>, vector<8x128xf32> -> vector<8x128xf32>
    %189 = arith.addf %187, %188 : vector<8x128xf32>
    %190 = arith.negf %189 : vector<8x128xf32>
    %191 = math.exp %190 : vector<8x128xf32>
    %cst_40 = arith.constant 1.000000e+00 : f32
    %192 = vector.broadcast %cst_40 : f32 to vector<8x128xf32>
    %193 = arith.addf %192, %191 : vector<8x128xf32>
    %194 = arith.divf %192, %193 : vector<8x128xf32>
    %195 = vector.extract_strided_slice %194 {offsets = [0, 0], sizes = [8, 32], strides = [1, 1]} : vector<8x128xf32> to vector<8x32xf32>
    %196 = vector.extract_strided_slice %194 {offsets = [0, 32], sizes = [8, 32], strides = [1, 1]} : vector<8x128xf32> to vector<8x32xf32>
    %197 = vector.extract_strided_slice %194 {offsets = [0, 64], sizes = [8, 32], strides = [1, 1]} : vector<8x128xf32> to vector<8x32xf32>
    %cst_41 = arith.constant 2.000000e+00 : f32
    %198 = vector.broadcast %cst_41 : f32 to vector<8x32xf32>
    %199 = arith.mulf %198, %197 : vector<8x32xf32>
    %cst_42 = arith.constant 1.000000e+00 : f32
    %200 = vector.broadcast %cst_42 : f32 to vector<8x32xf32>
    %201 = arith.subf %199, %200 : vector<8x32xf32>
    %202 = vector.extract_strided_slice %194 {offsets = [0, 96], sizes = [8, 32], strides = [1, 1]} : vector<8x128xf32> to vector<8x32xf32>
    %203 = arith.mulf %196, %186 : vector<8x32xf32>
    %204 = arith.mulf %195, %201 : vector<8x32xf32>
    %205 = arith.addf %203, %204 : vector<8x32xf32>
    %206 = math.tanh %205 : vector<8x32xf32>
    %207 = arith.mulf %202, %206 : vector<8x32xf32>
    %c7_i32 = arith.constant 7 : i32
    %208 = vector.broadcast %c7_i32 : i32 to vector<8x32xi32>
    %209 = arith.cmpi sgt, %8, %208 : vector<8x32xi32>
    %210 = arith.select %209, %207, %185 : vector<8x32xi1>, vector<8x32xf32>
    %c0_43 = arith.constant 0 : index
    %c0_44 = arith.constant 0 : index
    %211 = vector.load %arg5[%c0_43, %c0_44] : memref<8x32xf32, #tpu.memory_space<vmem>>, vector<8x32xf32>
    tpu.vector_store %arg5[%c0_43, %c0_44], %210 {strides = array<i32>} : memref<8x32xf32, #tpu.memory_space<vmem>>, vector<8x32xf32>,
    return
  }
}

</mosaic_0001>

<llo_original>
// kernel: lstm_pallas.1
$region0: #{lstm_pallas.1}
  #allocation0 [shape = 'u32[]', space=smem, size = 0x4, offset = 0x4, fixed_abs, tag = 'smem constant byte address 0x4 - core index']
  #allocation1 [shape = 'u32[144,128]{1,0:T(1,128)}', space=vmem, size = 0x12000, scoped, tag = 'internal scratch']
  %s0 = inlined_call_operand.vmem [shape: f32[64,32], index: 0, kind: input, shape index: {}]
  %s1 = inlined_call_operand.vmem [shape: s32[8,1], index: 1, kind: input, shape index: {}]
  %s2 = inlined_call_operand.vmem [shape: f32[32,128], index: 2, kind: input, shape index: {}]
  %s3 = inlined_call_operand.vmem [shape: f32[32,128], index: 3, kind: input, shape index: {}]
  %s4 = inlined_call_operand.vmem [shape: f32[1,128], index: 4, kind: input, shape index: {}]
  %s5 = inlined_call_operand.vmem [shape: f32[8,32], index: 5, kind: output, shape index: {}]
  %s6 = sld [smem:[#allocation0]]
  $region30: #{lstm_pallas.1} parent=0
    _
  %s8 = ssub.s32 1, %s6
  %s9 = scalar_select 0, %s8, %s6
  // Predicated region
  $region2: #{lstm_pallas.1} parent=0 // pred_check
    _
  $region3: #{lstm_pallas.1} parent=0 // pred_check_branch
    %11 = sbr.rel (0) target = $region5
  $region4: #{lstm_pallas.1} parent=0 // pred_region
    _
  $region5: #{lstm_pallas.1} parent=0 // pred_fallthru
    _
  // Predicated region
  $region6: #{lstm_pallas.1} parent=0 // pred_check
    _
  $region7: #{lstm_pallas.1} parent=0 // pred_check_branch
    %13 = sbr.rel (0) target = $region9
  $region8: #{lstm_pallas.1} parent=0 // pred_region
    _
  $region9: #{lstm_pallas.1} parent=0 // pred_fallthru
    _
  // Predicated region
  $region10: #{lstm_pallas.1} parent=0 // pred_check
    _
  $region11: #{lstm_pallas.1} parent=0 // pred_check_branch
    %15 = sbr.rel (0) target = $region13
  $region12: #{lstm_pallas.1} parent=0 // pred_region
    _
  $region13: #{lstm_pallas.1} parent=0 // pred_fallthru
    _
  // Predicated region
  $region14: #{lstm_pallas.1} parent=0 // pred_check
    _
  $region15: #{lstm_pallas.1} parent=0 // pred_check_branch
    %17 = sbr.rel (0) target = $region17
  $region16: #{lstm_pallas.1} parent=0 // pred_region
    _
  $region17: #{lstm_pallas.1} parent=0 // pred_fallthru
    _
  // Predicated region
  $region18: #{lstm_pallas.1} parent=0 // pred_check
    _
  $region19: #{lstm_pallas.1} parent=0 // pred_check_branch
    %19 = sbr.rel (0) target = $region21
  $region20: #{lstm_pallas.1} parent=0 // pred_region
    _
  $region21: #{lstm_pallas.1} parent=0 // pred_fallthru
    _
  %v20 = vld [vmem:[%s0] sm:$0xff]
  %v21 = vld [vmem:[%s0 + $0x8] sm:$0xff]
  %v22 = vld [vmem:[%s0 + $0x10] sm:$0xff]
  %v23 = vld [vmem:[%s0 + $0x18] sm:$0xff]
  %v24 = vld [vmem:[%s0 + $0x20] sm:$0xff]
  %v25 = vld [vmem:[%s0 + $0x28] sm:$0xff]
  %v26 = vld [vmem:[%s0 + $0x30] sm:$0xff]
  %v27 = vld [vmem:[%s0 + $0x38] sm:$0xff]
  %v28 = vld [vmem:[%s2] sm:$0xff]
  %v29 = vld [vmem:[%s2 + $0x8] sm:$0xff]
  %v30 = vld [vmem:[%s2 + $0x10] sm:$0xff]
  %v31 = vld [vmem:[%s2 + $0x18] sm:$0xff]
  %v32 = vld [vmem:[%s4] sm:$0x1]
  %v34 = vlaneseq
  %v35 = vshrl.u32 %v34, 7
  %v36 = vsub.s32 0, %v35
  %v37 = vrot.slane %v32, %v36
  %vm39 = vcmask 261120
  %v41 = vsel %vm39, %v20, 0
  %v44 = vsel %vm39, %v21, 0
  %v47 = vsel %vm39, %v22, 0
  %v50 = vsel %vm39, %v23, 0
  %v53 = vsel %vm39, %v24, 0
  %v56 = vsel %vm39, %v25, 0
  %v59 = vsel %vm39, %v26, 0
  %v62 = vsel %vm39, %v27, 0
  %64 = vmatprep.subr.mxu0 0.0
  %65 = vmatpush1.msra.mxu0 %v28
  %66 = vmatprep.subr.mxu0 0.0
  %67 = vmatpush1.msra.mxu0 %v29
  %68 = vmatprep.subr.mxu0 0.0
  %69 = vmatpush1.msra.mxu0 %v30
  %70 = vmatprep.subr.mxu0 0.0
  %71 = vmatpush1.msra.mxu0 %v31
  %72 = vmatprep.subr.mxu0 0.0
  %73 = vmatpush1.msra.mxu0 0.0
  %74 = vmatprep.subr.mxu0 0.0
  %75 = vmatpush1.msra.mxu0 0.0
  %76 = vmatprep.subr.mxu0 0.0
  %77 = vmatpush1.msra.mxu0 0.0
  %78 = vmatprep.subr.mxu0 0.0
  %79 = vmatpush1.msra.mxu0 0.0
  %80 = vmatprep.subr.mxu0 0.0
  %81 = vmatpush1.msra.mxu0 0.0
  %82 = vmatprep.subr.mxu0 0.0
  %83 = vmatpush1.msra.mxu0 0.0
  %84 = vmatprep.subr.mxu0 0.0
  %85 = vmatpush1.msra.mxu0 0.0
  %86 = vmatprep.subr.mxu0 0.0
  %87 = vmatpush1.msra.mxu0 0.0
  %88 = vmatprep.subr.mxu0 0.0
  %89 = vmatpush1.msra.mxu0 0.0
  %90 = vmatprep.subr.mxu0 0.0
  %91 = vmatpush1.msra.mxu0 0.0
  %92 = vmatprep.subr.mxu0 0.0
  %93 = vmatpush1.msra.mxu0 0.0
  %94 = vmatprep.subr.mxu0 0.0
  %95 = vmatpush1.msra.mxu0 0.0
  %96 = vmatprep.subr.mxu0 0.0
  %97 = vmatpush1.msra.mxu0 0.0
  %98 = vmatprep.subr.mxu0 0.0
  %99 = vmatpush1.msra.mxu0 0.0
  %100 = vmatprep.subr.mxu0 0.0
  %101 = vmatpush1.msra.mxu0 0.0
  %102 = vmatprep.subr.mxu0 0.0
  %103 = vmatpush1.msra.mxu0 0.0
  %104 = vmatprep.subr.mxu0 0.0
  %105 = vmatpush1.msra.mxu0 0.0
  %106 = vmatprep.subr.mxu0 0.0
  %107 = vmatpush1.msra.mxu0 0.0
  %108 = vmatprep.subr.mxu0 0.0
  %109 = vmatpush1.msra.mxu0 0.0
  %110 = vmatprep.subr.mxu0 0.0
  %111 = vmatpush1.msra.mxu0 0.0
  %112 = vmatprep.subr.mxu0 0.0
  %113 = vmatpush1.msra.mxu0 0.0
  %114 = vmatprep.subr.mxu0 0.0
  %115 = vmatpush1.msra.mxu0 0.0
  %116 = vmatprep.subr.mxu0 0.0
  %117 = vmatpush1.msra.mxu0 0.0
  %118 = vmatprep.subr.mxu0 0.0
  %119 = vmatpush1.msra.mxu0 0.0
  %120 = vmatprep.subr.mxu0 0.0
  %121 = vmatpush1.msra.mxu0 0.0
  %122 = vmatprep.subr.mxu0 0.0
  %123 = vmatpush1.msra.mxu0 0.0
  %124 = vmatprep.subr.mxu0 0.0
  %125 = vmatpush1.msra.mxu0 0.0
  %126 = vmatprep.subr.mxu0 0.0
  %127 = vmatpush1.msra.mxu0 0.0
  %128 = vmatprep.mubr.f32.mxu0 0.0
  %129 = vmatmul.mubr.f32.gmra.mrb[0].mxu0 %v41
  %v130 = vpop.f32.mrb[0].mxu0
  %v131 = vadd.f32 %v37, %v130
  %v132 = vpop.f32.mrb[0].mxu0
  %133 = vmatprep.mubr.f32.mxu0 0.0
  %134 = vmatmul.mubr.f32.gmra.mrb[0].mxu0 %v44
  %v135 = vpop.f32.mrb[0].mxu0
  %v136 = vadd.f32 %v37, %v135
  %v137 = vpop.f32.mrb[0].mxu0
  %138 = vmatprep.mubr.f32.mxu0 0.0
  %139 = vmatmul.mubr.f32.gmra.mrb[0].mxu0 %v47
  %v140 = vpop.f32.mrb[0].mxu0
  %v141 = vadd.f32 %v37, %v140
  %v142 = vpop.f32.mrb[0].mxu0
  %143 = vmatprep.mubr.f32.mxu0 0.0
  %144 = vmatmul.mubr.f32.gmra.mrb[0].mxu0 %v50
  %v145 = vpop.f32.mrb[0].mxu0
  %v146 = vadd.f32 %v37, %v145
  %v147 = vpop.f32.mrb[0].mxu0
  %148 = vmatprep.mubr.f32.mxu0 0.0
  %149 = vmatmul.mubr.f32.gmra.mrb[0].mxu0 %v53
  %v150 = vpop.f32.mrb[0].mxu0
  %v151 = vadd.f32 %v37, %v150
  %v152 = vpop.f32.mrb[0].mxu0
  %153 = vmatprep.mubr.f32.mxu0 0.0
  %154 = vmatmul.mubr.f32.gmra.mrb[0].mxu0 %v56
  %v155 = vpop.f32.mrb[0].mxu0
  %v156 = vadd.f32 %v37, %v155
  %v157 = vpop.f32.mrb[0].mxu0
  %158 = vmatprep.mubr.f32.mxu0 0.0
  %159 = vmatmul.mubr.f32.gmra.mrb[0].mxu0 %v59
  %v160 = vpop.f32.mrb[0].mxu0
  %v161 = vadd.f32 %v37, %v160
  %v162 = vpop.f32.mrb[0].mxu0
  %163 = vmatprep.mubr.f32.mxu0 0.0
  %164 = vmatmul.mubr.f32.gmra.mrb[0].mxu0 %v62
  %v165 = vpop.f32.mrb[0].mxu0
  %v166 = vadd.f32 %v37, %v165
  %v167 = vpop.f32.mrb[0].mxu0
  %168 = vdwg.mxu0
  %v169 = vld [vmem:[%s1] sm:$0xff]
  %170 = vset.pattern.permute.xlu0 0
  %171 = vperm.xlu0 %170, %v169
  %v172 = vpop.permute.xlu0 %171
  %v173 = vld [vmem:[%s3] sm:$0xff]
  %v174 = vld [vmem:[%s3 + $0x8] sm:$0xff]
  %v175 = vld [vmem:[%s3 + $0x10] sm:$0xff]
  %v176 = vld [vmem:[%s3 + $0x18] sm:$0xff]
  %v178 = vsel %vm39, 0.0, 0
  %180 = vmatprep.subr.mxu0 0.0
  %181 = vmatpush1.msra.mxu0 %v173
  %182 = vmatprep.subr.mxu0 0.0
  %183 = vmatpush1.msra.mxu0 %v174
  %184 = vmatprep.subr.mxu0 0.0
  %185 = vmatpush1.msra.mxu0 %v175
  %186 = vmatprep.subr.mxu0 0.0
  %187 = vmatpush1.msra.mxu0 %v176
  %188 = vmatprep.subr.mxu0 0.0
  %189 = vmatpush1.msra.mxu0 0.0
  %190 = vmatprep.subr.mxu0 0.0
  %191 = vmatpush1.msra.mxu0 0.0
  %192 = vmatprep.subr.mxu0 0.0
  %193 = vmatpush1.msra.mxu0 0.0
  %194 = vmatprep.subr.mxu0 0.0
  %195 = vmatpush1.msra.mxu0 0.0
  %196 = vmatprep.subr.mxu0 0.0
  %197 = vmatpush1.msra.mxu0 0.0
  %198 = vmatprep.subr.mxu0 0.0
  %199 = vmatpush1.msra.mxu0 0.0
  %200 = vmatprep.subr.mxu0 0.0
  %201 = vmatpush1.msra.mxu0 0.0
  %202 = vmatprep.subr.mxu0 0.0
  %203 = vmatpush1.msra.mxu0 0.0
  %204 = vmatprep.subr.mxu0 0.0
  %205 = vmatpush1.msra.mxu0 0.0
  %206 = vmatprep.subr.mxu0 0.0
  %207 = vmatpush1.msra.mxu0 0.0
  %208 = vmatprep.subr.mxu0 0.0
  %209 = vmatpush1.msra.mxu0 0.0
  %210 = vmatprep.subr.mxu0 0.0
  %211 = vmatpush1.msra.mxu0 0.0
  %212 = vmatprep.subr.mxu0 0.0
  %213 = vmatpush1.msra.mxu0 0.0
  %214 = vmatprep.subr.mxu0 0.0
  %215 = vmatpush1.msra.mxu0 0.0
  %216 = vmatprep.subr.mxu0 0.0
  %217 = vmatpush1.msra.mxu0 0.0
  %218 = vmatprep.subr.mxu0 0.0
  %219 = vmatpush1.msra.mxu0 0.0
  %220 = vmatprep.subr.mxu0 0.0
  %221 = vmatpush1.msra.mxu0 0.0
  %222 = vmatprep.subr.mxu0 0.0
  %223 = vmatpush1.msra.mxu0 0.0
  %224 = vmatprep.subr.mxu0 0.0
  %225 = vmatpush1.msra.mxu0 0.0
  %226 = vmatprep.subr.mxu0 0.0
  %227 = vmatpush1.msra.mxu0 0.0
  %228 = vmatprep.subr.mxu0 0.0
  %229 = vmatpush1.msra.mxu0 0.0
  %230 = vmatprep.subr.mxu0 0.0
  %231 = vmatpush1.msra.mxu0 0.0
  %232 = vmatprep.subr.mxu0 0.0
  %233 = vmatpush1.msra.mxu0 0.0
  %234 = vmatprep.subr.mxu0 0.0
  %235 = vmatpush1.msra.mxu0 0.0
  %236 = vmatprep.subr.mxu0 0.0
  %237 = vmatpush1.msra.mxu0 0.0
  %238 = vmatprep.subr.mxu0 0.0
  %239 = vmatpush1.msra.mxu0 0.0
  %240 = vmatprep.subr.mxu0 0.0
  %241 = vmatpush1.msra.mxu0 0.0
  %242 = vmatprep.subr.mxu0 0.0
  %243 = vmatpush1.msra.mxu0 0.0
  %244 = vmatprep.mubr.f32.mxu0 0.0
  %245 = vmatmul.mubr.f32.gmra.mrb[0].mxu0 %v178
  %v246 = vpop.f32.mrb[0].mxu0
  %v247 = vadd.f32 0.0, %v246
  %v248 = vpop.f32.mrb[0].mxu0
  %249 = vdwg.mxu0
  %v250 = vadd.f32 %v131, %v247
  %v251 = vxor.u32 %v250, 2147483648
  %v252 = vmul.f32 %v251, 1.442695
  %v253 = vpow.pop %v252
  %v254 = vadd.f32 %v253, 1.0
  %v255 = vrcp.pop %v254
  %v256 = vmul.f32 1.0, %v255
  %v257 = vmul.f32 %v256, 2.0
  %v258 = vsub.f32 %v257, 1.0
  %v259 = vmul.f32 %v256, 0.0
  %261 = vrot.lane.b32.xlu0 %v258, 64
  %v262 = vpop.permute.xlu0 %261
  %v264 = vmul.f32 %v256, %v262
  %266 = vrot.lane.b32.xlu0 %v264, 32
  %v267 = vpop.permute.xlu0 %266
  %v269 = vadd.f32 %v259, %v267
  %v270 = vtanh.pop %v269
  %272 = vrot.lane.b32.xlu0 %v270, 64
  %v273 = vpop.permute.xlu0 %272
  %v275 = vmul.f32 %v256, %v273
  %vm276 = vcmp.gt.s32.totalorder %v172, 0
  %v277 = vsel %vm276, %v275, 0.0
  %v278 = vsel %vm276, %v269, 0.0
  %280 = vrot.lane.b32.xlu0 %v277, 32
  %v281 = vpop.permute.xlu0 %280
  %v282 = vsel %vm39, %v281, 0
  %284 = vmatprep.subr.mxu0 0.0
  %285 = vmatpush1.msra.mxu0 %v173
  %286 = vmatprep.subr.mxu0 0.0
  %287 = vmatpush1.msra.mxu0 %v174
  %288 = vmatprep.subr.mxu0 0.0
  %289 = vmatpush1.msra.mxu0 %v175
  %290 = vmatprep.subr.mxu0 0.0
  %291 = vmatpush1.msra.mxu0 %v176
  %292 = vmatprep.subr.mxu0 0.0
  %293 = vmatpush1.msra.mxu0 0.0
  %294 = vmatprep.subr.mxu0 0.0
  %295 = vmatpush1.msra.mxu0 0.0
  %296 = vmatprep.subr.mxu0 0.0
  %297 = vmatpush1.msra.mxu0 0.0
  %298 = vmatprep.subr.mxu0 0.0
  %299 = vmatpush1.msra.mxu0 0.0
  %300 = vmatprep.subr.mxu0 0.0
  %301 = vmatpush1.msra.mxu0 0.0
  %302 = vmatprep.subr.mxu0 0.0
  %303 = vmatpush1.msra.mxu0 0.0
  %304 = vmatprep.subr.mxu0 0.0
  %305 = vmatpush1.msra.mxu0 0.0
  %306 = vmatprep.subr.mxu0 0.0
  %307 = vmatpush1.msra.mxu0 0.0
  %308 = vmatprep.subr.mxu0 0.0
  %309 = vmatpush1.msra.mxu0 0.0
  %310 = vmatprep.subr.mxu0 0.0
  %311 = vmatpush1.msra.mxu0 0.0
  %312 = vmatprep.subr.mxu0 0.0
  %313 = vmatpush1.msra.mxu0 0.0
  %314 = vmatprep.subr.mxu0 0.0
  %315 = vmatpush1.msra.mxu0 0.0
  %316 = vmatprep.subr.mxu0 0.0
  %317 = vmatpush1.msra.mxu0 0.0
  %318 = vmatprep.subr.mxu0 0.0
  %319 = vmatpush1.msra.mxu0 0.0
  %320 = vmatprep.subr.mxu0 0.0
  %321 = vmatpush1.msra.mxu0 0.0
  %322 = vmatprep.subr.mxu0 0.0
  %323 = vmatpush1.msra.mxu0 0.0
  %324 = vmatprep.subr.mxu0 0.0
  %325 = vmatpush1.msra.mxu0 0.0
  %326 = vmatprep.subr.mxu0 0.0
  %327 = vmatpush1.msra.mxu0 0.0
  %328 = vmatprep.subr.mxu0 0.0
  %329 = vmatpush1.msra.mxu0 0.0
  %330 = vmatprep.subr.mxu0 0.0
  %331 = vmatpush1.msra.mxu0 0.0
  %332 = vmatprep.subr.mxu0 0.0
  %333 = vmatpush1.msra.mxu0 0.0
  %334 = vmatprep.subr.mxu0 0.0
  %335 = vmatpush1.msra.mxu0 0.0
  %336 = vmatprep.subr.mxu0 0.0
  %337 = vmatpush1.msra.mxu0 0.0
  %338 = vmatprep.subr.mxu0 0.0
  %339 = vmatpush1.msra.mxu0 0.0
  %340 = vmatprep.subr.mxu0 0.0
  %341 = vmatpush1.msra.mxu0 0.0
  %342 = vmatprep.subr.mxu0 0.0
  %343 = vmatpush1.msra.mxu0 0.0
  %344 = vmatprep.subr.mxu0 0.0
  %345 = vmatpush1.msra.mxu0 0.0
  %346 = vmatprep.subr.mxu0 0.0
  %347 = vmatpush1.msra.mxu0 0.0
  %348 = vmatprep.mubr.f32.mxu0 0.0
  %349 = vmatmul.mubr.f32.gmra.mrb[0].mxu0 %v282
  %v350 = vpop.f32.mrb[0].mxu0
  %v351 = vadd.f32 0.0, %v350
  %v352 = vpop.f32.mrb[0].mxu0
  %353 = vdwg.mxu0
  %v354 = vadd.f32 %v136, %v351
  %v355 = vxor.u32 %v354, 2147483648
  %v356 = vmul.f32 %v355, 1.442695
  %v357 = vpow.pop %v356
  %v358 = vadd.f32 %v357, 1.0
  %v359 = vrcp.pop %v358
  %v360 = vmul.f32 1.0, %v359
  %v361 = vmul.f32 %v360, 2.0
  %v362 = vsub.f32 %v361, 1.0
  %v363 = vmul.f32 %v360, %v278
  %365 = vrot.lane.b32.xlu0 %v362, 64
  %v366 = vpop.permute.xlu0 %365
  %v368 = vmul.f32 %v360, %v366
  %370 = vrot.lane.b32.xlu0 %v368, 32
  %v371 = vpop.permute.xlu0 %370
  %v373 = vadd.f32 %v363, %v371
  %v374 = vtanh.pop %v373
  %376 = vrot.lane.b32.xlu0 %v374, 64
  %v377 = vpop.permute.xlu0 %376
  %v379 = vmul.f32 %v360, %v377
  %vm380 = vcmp.gt.s32.totalorder %v172, 1
  %v381 = vsel %vm380, %v379, %v277
  %v382 = vsel %vm380, %v373, %v278
  %384 = vrot.lane.b32.xlu0 %v381, 32
  %v385 = vpop.permute.xlu0 %384
  %v386 = vsel %vm39, %v385, 0
  %388 = vmatprep.subr.mxu0 0.0
  %389 = vmatpush1.msra.mxu0 %v173
  %390 = vmatprep.subr.mxu0 0.0
  %391 = vmatpush1.msra.mxu0 %v174
  %392 = vmatprep.subr.mxu0 0.0
  %393 = vmatpush1.msra.mxu0 %v175
  %394 = vmatprep.subr.mxu0 0.0
  %395 = vmatpush1.msra.mxu0 %v176
  %396 = vmatprep.subr.mxu0 0.0
  %397 = vmatpush1.msra.mxu0 0.0
  %398 = vmatprep.subr.mxu0 0.0
  %399 = vmatpush1.msra.mxu0 0.0
  %400 = vmatprep.subr.mxu0 0.0
  %401 = vmatpush1.msra.mxu0 0.0
  %402 = vmatprep.subr.mxu0 0.0
  %403 = vmatpush1.msra.mxu0 0.0
  %404 = vmatprep.subr.mxu0 0.0
  %405 = vmatpush1.msra.mxu0 0.0
  %406 = vmatprep.subr.mxu0 0.0
  %407 = vmatpush1.msra.mxu0 0.0
  %408 = vmatprep.subr.mxu0 0.0
  %409 = vmatpush1.msra.mxu0 0.0
  %410 = vmatprep.subr.mxu0 0.0
  %411 = vmatpush1.msra.mxu0 0.0
  %412 = vmatprep.subr.mxu0 0.0
  %413 = vmatpush1.msra.mxu0 0.0
  %414 = vmatprep.subr.mxu0 0.0
  %415 = vmatpush1.msra.mxu0 0.0
  %416 = vmatprep.subr.mxu0 0.0
  %417 = vmatpush1.msra.mxu0 0.0
  %418 = vmatprep.subr.mxu0 0.0
  %419 = vmatpush1.msra.mxu0 0.0
  %420 = vmatprep.subr.mxu0 0.0
  %421 = vmatpush1.msra.mxu0 0.0
  %422 = vmatprep.subr.mxu0 0.0
  %423 = vmatpush1.msra.mxu0 0.0
  %424 = vmatprep.subr.mxu0 0.0
  %425 = vmatpush1.msra.mxu0 0.0
  %426 = vmatprep.subr.mxu0 0.0
  %427 = vmatpush1.msra.mxu0 0.0
  %428 = vmatprep.subr.mxu0 0.0
  %429 = vmatpush1.msra.mxu0 0.0
  %430 = vmatprep.subr.mxu0 0.0
  %431 = vmatpush1.msra.mxu0 0.0
  %432 = vmatprep.subr.mxu0 0.0
  %433 = vmatpush1.msra.mxu0 0.0
  %434 = vmatprep.subr.mxu0 0.0
  %435 = vmatpush1.msra.mxu0 0.0
  %436 = vmatprep.subr.mxu0 0.0
  %437 = vmatpush1.msra.mxu0 0.0
  %438 = vmatprep.subr.mxu0 0.0
  %439 = vmatpush1.msra.mxu0 0.0
  %440 = vmatprep.subr.mxu0 0.0
  %441 = vmatpush1.msra.mxu0 0.0
  %442 = vmatprep.subr.mxu0 0.0
  %443 = vmatpush1.msra.mxu0 0.0
  %444 = vmatprep.subr.mxu0 0.0
  %445 = vmatpush1.msra.mxu0 0.0
  %446 = vmatprep.subr.mxu0 0.0
  %447 = vmatpush1.msra.mxu0 0.0
  %448 = vmatprep.subr.mxu0 0.0
  %449 = vmatpush1.msra.mxu0 0.0
  %450 = vmatprep.subr.mxu0 0.0
  %451 = vmatpush1.msra.mxu0 0.0
  %452 = vmatprep.mubr.f32.mxu0 0.0
  %453 = vmatmul.mubr.f32.gmra.mrb[0].mxu0 %v386
  %v454 = vpop.f32.mrb[0].mxu0
  %v455 = vadd.f32 0.0, %v454
  %v456 = vpop.f32.mrb[0].mxu0
  %457 = vdwg.mxu0
  %v458 = vadd.f32 %v141, %v455
  %v459 = vxor.u32 %v458, 2147483648
  %v460 = vmul.f32 %v459, 1.442695
  %v461 = vpow.pop %v460
  %v462 = vadd.f32 %v461, 1.0
  %v463 = vrcp.pop %v462
  %v464 = vmul.f32 1.0, %v463
  %v465 = vmul.f32 %v464, 2.0
  %v466 = vsub.f32 %v465, 1.0
  %v467 = vmul.f32 %v464, %v382
  %469 = vrot.lane.b32.xlu0 %v466, 64
  %v470 = vpop.permute.xlu0 %469
  %v472 = vmul.f32 %v464, %v470
  %474 = vrot.lane.b32.xlu0 %v472, 32
  %v475 = vpop.permute.xlu0 %474
  %v477 = vadd.f32 %v467, %v475
  %v478 = vtanh.pop %v477
  %480 = vrot.lane.b32.xlu0 %v478, 64
  %v481 = vpop.permute.xlu0 %480
  %v483 = vmul.f32 %v464, %v481
  %vm484 = vcmp.gt.s32.totalorder %v172, 2
  %v485 = vsel %vm484, %v483, %v381
  %v486 = vsel %vm484, %v477, %v382
  %488 = vrot.lane.b32.xlu0 %v485, 32
  %v489 = vpop.permute.xlu0 %488
  %v490 = vsel %vm39, %v489, 0
  %492 = vmatprep.subr.mxu0 0.0
  %493 = vmatpush1.msra.mxu0 %v173
  %494 = vmatprep.subr.mxu0 0.0
  %495 = vmatpush1.msra.mxu0 %v174
  %496 = vmatprep.subr.mxu0 0.0
  %497 = vmatpush1.msra.mxu0 %v175
  %498 = vmatprep.subr.mxu0 0.0
  %499 = vmatpush1.msra.mxu0 %v176
  %500 = vmatprep.subr.mxu0 0.0
  %501 = vmatpush1.msra.mxu0 0.0
  %502 = vmatprep.subr.mxu0 0.0
  %503 = vmatpush1.msra.mxu0 0.0
  %504 = vmatprep.subr.mxu0 0.0
  %505 = vmatpush1.msra.mxu0 0.0
  %506 = vmatprep.subr.mxu0 0.0
  %507 = vmatpush1.msra.mxu0 0.0
  %508 = vmatprep.subr.mxu0 0.0
  %509 = vmatpush1.msra.mxu0 0.0
  %510 = vmatprep.subr.mxu0 0.0
  %511 = vmatpush1.msra.mxu0 0.0
  %512 = vmatprep.subr.mxu0 0.0
  %513 = vmatpush1.msra.mxu0 0.0
  %514 = vmatprep.subr.mxu0 0.0
  %515 = vmatpush1.msra.mxu0 0.0
  %516 = vmatprep.subr.mxu0 0.0
  %517 = vmatpush1.msra.mxu0 0.0
  %518 = vmatprep.subr.mxu0 0.0
  %519 = vmatpush1.msra.mxu0 0.0
  %520 = vmatprep.subr.mxu0 0.0
  %521 = vmatpush1.msra.mxu0 0.0
  %522 = vmatprep.subr.mxu0 0.0
  %523 = vmatpush1.msra.mxu0 0.0
  %524 = vmatprep.subr.mxu0 0.0
  %525 = vmatpush1.msra.mxu0 0.0
  %526 = vmatprep.subr.mxu0 0.0
  %527 = vmatpush1.msra.mxu0 0.0
  %528 = vmatprep.subr.mxu0 0.0
  %529 = vmatpush1.msra.mxu0 0.0
  %530 = vmatprep.subr.mxu0 0.0
  %531 = vmatpush1.msra.mxu0 0.0
  %532 = vmatprep.subr.mxu0 0.0
  %533 = vmatpush1.msra.mxu0 0.0
  %534 = vmatprep.subr.mxu0 0.0
  %535 = vmatpush1.msra.mxu0 0.0
  %536 = vmatprep.subr.mxu0 0.0
  %537 = vmatpush1.msra.mxu0 0.0
  %538 = vmatprep.subr.mxu0 0.0
  %539 = vmatpush1.msra.mxu0 0.0
  %540 = vmatprep.subr.mxu0 0.0
  %541 = vmatpush1.msra.mxu0 0.0
  %542 = vmatprep.subr.mxu0 0.0
  %543 = vmatpush1.msra.mxu0 0.0
  %544 = vmatprep.subr.mxu0 0.0
  %545 = vmatpush1.msra.mxu0 0.0
  %546 = vmatprep.subr.mxu0 0.0
  %547 = vmatpush1.msra.mxu0 0.0
  %548 = vmatprep.subr.mxu0 0.0
  %549 = vmatpush1.msra.mxu0 0.0
  %550 = vmatprep.subr.mxu0 0.0
  %551 = vmatpush1.msra.mxu0 0.0
  %552 = vmatprep.subr.mxu0 0.0
  %553 = vmatpush1.msra.mxu0 0.0
  %554 = vmatprep.subr.mxu0 0.0
  %555 = vmatpush1.msra.mxu0 0.0
  %556 = vmatprep.mubr.f32.mxu0 0.0
  %557 = vmatmul.mubr.f32.gmra.mrb[0].mxu0 %v490
  %v558 = vpop.f32.mrb[0].mxu0
  %v559 = vadd.f32 0.0, %v558
  %v560 = vpop.f32.mrb[0].mxu0
  %561 = vdwg.mxu0
  %v562 = vadd.f32 %v146, %v559
  %v563 = vxor.u32 %v562, 2147483648
  %v564 = vmul.f32 %v563, 1.442695
  %v565 = vpow.pop %v564
  %v566 = vadd.f32 %v565, 1.0
  %v567 = vrcp.pop %v566
  %v568 = vmul.f32 1.0, %v567
  %v569 = vmul.f32 %v568, 2.0
  %v570 = vsub.f32 %v569, 1.0
  %v571 = vmul.f32 %v568, %v486
  %573 = vrot.lane.b32.xlu0 %v570, 64
  %v574 = vpop.permute.xlu0 %573
  %v576 = vmul.f32 %v568, %v574
  %578 = vrot.lane.b32.xlu0 %v576, 32
  %v579 = vpop.permute.xlu0 %578
  %v581 = vadd.f32 %v571, %v579
  %v582 = vtanh.pop %v581
  %584 = vrot.lane.b32.xlu0 %v582, 64
  %v585 = vpop.permute.xlu0 %584
  %v587 = vmul.f32 %v568, %v585
  %vm588 = vcmp.gt.s32.totalorder %v172, 3
  %v589 = vsel %vm588, %v587, %v485
  %v590 = vsel %vm588, %v581, %v486
  %592 = vrot.lane.b32.xlu0 %v589, 32
  %v593 = vpop.permute.xlu0 %592
  %v594 = vsel %vm39, %v593, 0
  %596 = vmatprep.subr.mxu0 0.0
  %597 = vmatpush1.msra.mxu0 %v173
  %598 = vmatprep.subr.mxu0 0.0
  %599 = vmatpush1.msra.mxu0 %v174
  %600 = vmatprep.subr.mxu0 0.0
  %601 = vmatpush1.msra.mxu0 %v175
  %602 = vmatprep.subr.mxu0 0.0
  %603 = vmatpush1.msra.mxu0 %v176
  %604 = vmatprep.subr.mxu0 0.0
  %605 = vmatpush1.msra.mxu0 0.0
  %606 = vmatprep.subr.mxu0 0.0
  %607 = vmatpush1.msra.mxu0 0.0
  %608 = vmatprep.subr.mxu0 0.0
  %609 = vmatpush1.msra.mxu0 0.0
  %610 = vmatprep.subr.mxu0 0.0
  %611 = vmatpush1.msra.mxu0 0.0
  %612 = vmatprep.subr.mxu0 0.0
  %613 = vmatpush1.msra.mxu0 0.0
  %614 = vmatprep.subr.mxu0 0.0
  %615 = vmatpush1.msra.mxu0 0.0
  %616 = vmatprep.subr.mxu0 0.0
  %617 = vmatpush1.msra.mxu0 0.0
  %618 = vmatprep.subr.mxu0 0.0
  %619 = vmatpush1.msra.mxu0 0.0
  %620 = vmatprep.subr.mxu0 0.0
  %621 = vmatpush1.msra.mxu0 0.0
  %622 = vmatprep.subr.mxu0 0.0
  %623 = vmatpush1.msra.mxu0 0.0
  %624 = vmatprep.subr.mxu0 0.0
  %625 = vmatpush1.msra.mxu0 0.0
  %626 = vmatprep.subr.mxu0 0.0
  %627 = vmatpush1.msra.mxu0 0.0
  %628 = vmatprep.subr.mxu0 0.0
  %629 = vmatpush1.msra.mxu0 0.0
  %630 = vmatprep.subr.mxu0 0.0
  %631 = vmatpush1.msra.mxu0 0.0
  %632 = vmatprep.subr.mxu0 0.0
  %633 = vmatpush1.msra.mxu0 0.0
  %634 = vmatprep.subr.mxu0 0.0
  %635 = vmatpush1.msra.mxu0 0.0
  %636 = vmatprep.subr.mxu0 0.0
  %637 = vmatpush1.msra.mxu0 0.0
  %638 = vmatprep.subr.mxu0 0.0
  %639 = vmatpush1.msra.mxu0 0.0
  %640 = vmatprep.subr.mxu0 0.0
  %641 = vmatpush1.msra.mxu0 0.0
  %642 = vmatprep.subr.mxu0 0.0
  %643 = vmatpush1.msra.mxu0 0.0
  %644 = vmatprep.subr.mxu0 0.0
  %645 = vmatpush1.msra.mxu0 0.0
  %646 = vmatprep.subr.mxu0 0.0
  %647 = vmatpush1.msra.mxu0 0.0
  %648 = vmatprep.subr.mxu0 0.0
  %649 = vmatpush1.msra.mxu0 0.0
  %650 = vmatprep.subr.mxu0 0.0
  %651 = vmatpush1.msra.mxu0 0.0
  %652 = vmatprep.subr.mxu0 0.0
  %653 = vmatpush1.msra.mxu0 0.0
  %654 = vmatprep.subr.mxu0 0.0
  %655 = vmatpush1.msra.mxu0 0.0
  %656 = vmatprep.subr.mxu0 0.0
  %657 = vmatpush1.msra.mxu0 0.0
  %658 = vmatprep.subr.mxu0 0.0
  %659 = vmatpush1.msra.mxu0 0.0
  %660 = vmatprep.mubr.f32.mxu0 0.0
  %661 = vmatmul.mubr.f32.gmra.mrb[0].mxu0 %v594
  %v662 = vpop.f32.mrb[0].mxu0
  %v663 = vadd.f32 0.0, %v662
  %v664 = vpop.f32.mrb[0].mxu0
  %665 = vdwg.mxu0
  %v666 = vadd.f32 %v151, %v663
  %v667 = vxor.u32 %v666, 2147483648
  %v668 = vmul.f32 %v667, 1.442695
  %v669 = vpow.pop %v668
  %v670 = vadd.f32 %v669, 1.0
  %v671 = vrcp.pop %v670
  %v672 = vmul.f32 1.0, %v671
  %v673 = vmul.f32 %v672, 2.0
  %v674 = vsub.f32 %v673, 1.0
  %v675 = vmul.f32 %v672, %v590
  %677 = vrot.lane.b32.xlu0 %v674, 64
  %v678 = vpop.permute.xlu0 %677
  %v680 = vmul.f32 %v672, %v678
  %682 = vrot.lane.b32.xlu0 %v680, 32
  %v683 = vpop.permute.xlu0 %682
  %v685 = vadd.f32 %v675, %v683
  %v686 = vtanh.pop %v685
  %688 = vrot.lane.b32.xlu0 %v686, 64
  %v689 = vpop.permute.xlu0 %688
  %v691 = vmul.f32 %v672, %v689
  %vm692 = vcmp.gt.s32.totalorder %v172, 4
  %v693 = vsel %vm692, %v691, %v589
  %v694 = vsel %vm692, %v685, %v590
  %696 = vrot.lane.b32.xlu0 %v693, 32
  %v697 = vpop.permute.xlu0 %696
  %v698 = vsel %vm39, %v697, 0
  %700 = vmatprep.subr.mxu0 0.0
  %701 = vmatpush1.msra.mxu0 %v173
  %702 = vmatprep.subr.mxu0 0.0
  %703 = vmatpush1.msra.mxu0 %v174
  %704 = vmatprep.subr.mxu0 0.0
  %705 = vmatpush1.msra.mxu0 %v175
  %706 = vmatprep.subr.mxu0 0.0
  %707 = vmatpush1.msra.mxu0 %v176
  %708 = vmatprep.subr.mxu0 0.0
  %709 = vmatpush1.msra.mxu0 0.0
  %710 = vmatprep.subr.mxu0 0.0
  %711 = vmatpush1.msra.mxu0 0.0
  %712 = vmatprep.subr.mxu0 0.0
  %713 = vmatpush1.msra.mxu0 0.0
  %714 = vmatprep.subr.mxu0 0.0
  %715 = vmatpush1.msra.mxu0 0.0
  %716 = vmatprep.subr.mxu0 0.0
  %717 = vmatpush1.msra.mxu0 0.0
  %718 = vmatprep.subr.mxu0 0.0
  %719 = vmatpush1.msra.mxu0 0.0
  %720 = vmatprep.subr.mxu0 0.0
  %721 = vmatpush1.msra.mxu0 0.0
  %722 = vmatprep.subr.mxu0 0.0
  %723 = vmatpush1.msra.mxu0 0.0
  %724 = vmatprep.subr.mxu0 0.0
  %725 = vmatpush1.msra.mxu0 0.0
  %726 = vmatprep.subr.mxu0 0.0
  %727 = vmatpush1.msra.mxu0 0.0
  %728 = vmatprep.subr.mxu0 0.0
  %729 = vmatpush1.msra.mxu0 0.0
  %730 = vmatprep.subr.mxu0 0.0
  %731 = vmatpush1.msra.mxu0 0.0
  %732 = vmatprep.subr.mxu0 0.0
  %733 = vmatpush1.msra.mxu0 0.0
  %734 = vmatprep.subr.mxu0 0.0
  %735 = vmatpush1.msra.mxu0 0.0
  %736 = vmatprep.subr.mxu0 0.0
  %737 = vmatpush1.msra.mxu0 0.0
  %738 = vmatprep.subr.mxu0 0.0
  %739 = vmatpush1.msra.mxu0 0.0
  %740 = vmatprep.subr.mxu0 0.0
  %741 = vmatpush1.msra.mxu0 0.0
  %742 = vmatprep.subr.mxu0 0.0
  %743 = vmatpush1.msra.mxu0 0.0
  %744 = vmatprep.subr.mxu0 0.0
  %745 = vmatpush1.msra.mxu0 0.0
  %746 = vmatprep.subr.mxu0 0.0
  %747 = vmatpush1.msra.mxu0 0.0
  %748 = vmatprep.subr.mxu0 0.0
  %749 = vmatpush1.msra.mxu0 0.0
  %750 = vmatprep.subr.mxu0 0.0
  %751 = vmatpush1.msra.mxu0 0.0
  %752 = vmatprep.subr.mxu0 0.0
  %753 = vmatpush1.msra.mxu0 0.0
  %754 = vmatprep.subr.mxu0 0.0
  %755 = vmatpush1.msra.mxu0 0.0
  %756 = vmatprep.subr.mxu0 0.0
  %757 = vmatpush1.msra.mxu0 0.0
  %758 = vmatprep.subr.mxu0 0.0
  %759 = vmatpush1.msra.mxu0 0.0
  %760 = vmatprep.subr.mxu0 0.0
  %761 = vmatpush1.msra.mxu0 0.0
  %762 = vmatprep.subr.mxu0 0.0
  %763 = vmatpush1.msra.mxu0 0.0
  %764 = vmatprep.mubr.f32.mxu0 0.0
  %765 = vmatmul.mubr.f32.gmra.mrb[0].mxu0 %v698
  %v766 = vpop.f32.mrb[0].mxu0
  %v767 = vadd.f32 0.0, %v766
  %v768 = vpop.f32.mrb[0].mxu0
  %769 = vdwg.mxu0
  %v770 = vadd.f32 %v156, %v767
  %v771 = vxor.u32 %v770, 2147483648
  %v772 = vmul.f32 %v771, 1.442695
  %v773 = vpow.pop %v772
  %v774 = vadd.f32 %v773, 1.0
  %v775 = vrcp.pop %v774
  %v776 = vmul.f32 1.0, %v775
  %v777 = vmul.f32 %v776, 2.0
  %v778 = vsub.f32 %v777, 1.0
  %v779 = vmul.f32 %v776, %v694
  %781 = vrot.lane.b32.xlu0 %v778, 64
  %v782 = vpop.permute.xlu0 %781
  %v784 = vmul.f32 %v776, %v782
  %786 = vrot.lane.b32.xlu0 %v784, 32
  %v787 = vpop.permute.xlu0 %786
  %v789 = vadd.f32 %v779, %v787
  %v790 = vtanh.pop %v789
  %792 = vrot.lane.b32.xlu0 %v790, 64
  %v793 = vpop.permute.xlu0 %792
  %v795 = vmul.f32 %v776, %v793
  %vm796 = vcmp.gt.s32.totalorder %v172, 5
  %v797 = vsel %vm796, %v795, %v693
  %v798 = vsel %vm796, %v789, %v694
  %800 = vrot.lane.b32.xlu0 %v797, 32
  %v801 = vpop.permute.xlu0 %800
  %v802 = vsel %vm39, %v801, 0
  %804 = vmatprep.subr.mxu0 0.0
  %805 = vmatpush1.msra.mxu0 %v173
  %806 = vmatprep.subr.mxu0 0.0
  %807 = vmatpush1.msra.mxu0 %v174
  %808 = vmatprep.subr.mxu0 0.0
  %809 = vmatpush1.msra.mxu0 %v175
  %810 = vmatprep.subr.mxu0 0.0
  %811 = vmatpush1.msra.mxu0 %v176
  %812 = vmatprep.subr.mxu0 0.0
  %813 = vmatpush1.msra.mxu0 0.0
  %814 = vmatprep.subr.mxu0 0.0
  %815 = vmatpush1.msra.mxu0 0.0
  %816 = vmatprep.subr.mxu0 0.0
  %817 = vmatpush1.msra.mxu0 0.0
  %818 = vmatprep.subr.mxu0 0.0
  %819 = vmatpush1.msra.mxu0 0.0
  %820 = vmatprep.subr.mxu0 0.0
  %821 = vmatpush1.msra.mxu0 0.0
  %822 = vmatprep.subr.mxu0 0.0
  %823 = vmatpush1.msra.mxu0 0.0
  %824 = vmatprep.subr.mxu0 0.0
  %825 = vmatpush1.msra.mxu0 0.0
  %826 = vmatprep.subr.mxu0 0.0
  %827 = vmatpush1.msra.mxu0 0.0
  %828 = vmatprep.subr.mxu0 0.0
  %829 = vmatpush1.msra.mxu0 0.0
  %830 = vmatprep.subr.mxu0 0.0
  %831 = vmatpush1.msra.mxu0 0.0
  %832 = vmatprep.subr.mxu0 0.0
  %833 = vmatpush1.msra.mxu0 0.0
  %834 = vmatprep.subr.mxu0 0.0
  %835 = vmatpush1.msra.mxu0 0.0
  %836 = vmatprep.subr.mxu0 0.0
  %837 = vmatpush1.msra.mxu0 0.0
  %838 = vmatprep.subr.mxu0 0.0
  %839 = vmatpush1.msra.mxu0 0.0
  %840 = vmatprep.subr.mxu0 0.0
  %841 = vmatpush1.msra.mxu0 0.0
  %842 = vmatprep.subr.mxu0 0.0
  %843 = vmatpush1.msra.mxu0 0.0
  %844 = vmatprep.subr.mxu0 0.0
  %845 = vmatpush1.msra.mxu0 0.0
  %846 = vmatprep.subr.mxu0 0.0
  %847 = vmatpush1.msra.mxu0 0.0
  %848 = vmatprep.subr.mxu0 0.0
  %849 = vmatpush1.msra.mxu0 0.0
  %850 = vmatprep.subr.mxu0 0.0
  %851 = vmatpush1.msra.mxu0 0.0
  %852 = vmatprep.subr.mxu0 0.0
  %853 = vmatpush1.msra.mxu0 0.0
  %854 = vmatprep.subr.mxu0 0.0
  %855 = vmatpush1.msra.mxu0 0.0
  %856 = vmatprep.subr.mxu0 0.0
  %857 = vmatpush1.msra.mxu0 0.0
  %858 = vmatprep.subr.mxu0 0.0
  %859 = vmatpush1.msra.mxu0 0.0
  %860 = vmatprep.subr.mxu0 0.0
  %861 = vmatpush1.msra.mxu0 0.0
  %862 = vmatprep.subr.mxu0 0.0
  %863 = vmatpush1.msra.mxu0 0.0
  %864 = vmatprep.subr.mxu0 0.0
  %865 = vmatpush1.msra.mxu0 0.0
  %866 = vmatprep.subr.mxu0 0.0
  %867 = vmatpush1.msra.mxu0 0.0
  %868 = vmatprep.mubr.f32.mxu0 0.0
  %869 = vmatmul.mubr.f32.gmra.mrb[0].mxu0 %v802
  %v870 = vpop.f32.mrb[0].mxu0
  %v871 = vadd.f32 0.0, %v870
  %v872 = vpop.f32.mrb[0].mxu0
  %873 = vdwg.mxu0
  %v874 = vadd.f32 %v161, %v871
  %v875 = vxor.u32 %v874, 2147483648
  %v876 = vmul.f32 %v875, 1.442695
  %v877 = vpow.pop %v876
  %v878 = vadd.f32 %v877, 1.0
  %v879 = vrcp.pop %v878
  %v880 = vmul.f32 1.0, %v879
  %v881 = vmul.f32 %v880, 2.0
  %v882 = vsub.f32 %v881, 1.0
  %v883 = vmul.f32 %v880, %v798
  %885 = vrot.lane.b32.xlu0 %v882, 64
  %v886 = vpop.permute.xlu0 %885
  %v888 = vmul.f32 %v880, %v886
  %890 = vrot.lane.b32.xlu0 %v888, 32
  %v891 = vpop.permute.xlu0 %890
  %v893 = vadd.f32 %v883, %v891
  %v894 = vtanh.pop %v893
  %896 = vrot.lane.b32.xlu0 %v894, 64
  %v897 = vpop.permute.xlu0 %896
  %v899 = vmul.f32 %v880, %v897
  %vm900 = vcmp.gt.s32.totalorder %v172, 6
  %v901 = vsel %vm900, %v899, %v797
  %v902 = vsel %vm900, %v893, %v798
  %904 = vrot.lane.b32.xlu0 %v901, 32
  %v905 = vpop.permute.xlu0 %904
  %v906 = vsel %vm39, %v905, 0
  %908 = vmatprep.subr.mxu0 0.0
  %909 = vmatpush1.msra.mxu0 %v173
  %910 = vmatprep.subr.mxu0 0.0
  %911 = vmatpush1.msra.mxu0 %v174
  %912 = vmatprep.subr.mxu0 0.0
  %913 = vmatpush1.msra.mxu0 %v175
  %914 = vmatprep.subr.mxu0 0.0
  %915 = vmatpush1.msra.mxu0 %v176
  %916 = vmatprep.subr.mxu0 0.0
  %917 = vmatpush1.msra.mxu0 0.0
  %918 = vmatprep.subr.mxu0 0.0
  %919 = vmatpush1.msra.mxu0 0.0
  %920 = vmatprep.subr.mxu0 0.0
  %921 = vmatpush1.msra.mxu0 0.0
  %922 = vmatprep.subr.mxu0 0.0
  %923 = vmatpush1.msra.mxu0 0.0
  %924 = vmatprep.subr.mxu0 0.0
  %925 = vmatpush1.msra.mxu0 0.0
  %926 = vmatprep.subr.mxu0 0.0
  %927 = vmatpush1.msra.mxu0 0.0
  %928 = vmatprep.subr.mxu0 0.0
  %929 = vmatpush1.msra.mxu0 0.0
  %930 = vmatprep.subr.mxu0 0.0
  %931 = vmatpush1.msra.mxu0 0.0
  %932 = vmatprep.subr.mxu0 0.0
  %933 = vmatpush1.msra.mxu0 0.0
  %934 = vmatprep.subr.mxu0 0.0
  %935 = vmatpush1.msra.mxu0 0.0
  %936 = vmatprep.subr.mxu0 0.0
  %937 = vmatpush1.msra.mxu0 0.0
  %938 = vmatprep.subr.mxu0 0.0
  %939 = vmatpush1.msra.mxu0 0.0
  %940 = vmatprep.subr.mxu0 0.0
  %941 = vmatpush1.msra.mxu0 0.0
  %942 = vmatprep.subr.mxu0 0.0
  %943 = vmatpush1.msra.mxu0 0.0
  %944 = vmatprep.subr.mxu0 0.0
  %945 = vmatpush1.msra.mxu0 0.0
  %946 = vmatprep.subr.mxu0 0.0
  %947 = vmatpush1.msra.mxu0 0.0
  %948 = vmatprep.subr.mxu0 0.0
  %949 = vmatpush1.msra.mxu0 0.0
  %950 = vmatprep.subr.mxu0 0.0
  %951 = vmatpush1.msra.mxu0 0.0
  %952 = vmatprep.subr.mxu0 0.0
  %953 = vmatpush1.msra.mxu0 0.0
  %954 = vmatprep.subr.mxu0 0.0
  %955 = vmatpush1.msra.mxu0 0.0
  %956 = vmatprep.subr.mxu0 0.0
  %957 = vmatpush1.msra.mxu0 0.0
  %958 = vmatprep.subr.mxu0 0.0
  %959 = vmatpush1.msra.mxu0 0.0
  %960 = vmatprep.subr.mxu0 0.0
  %961 = vmatpush1.msra.mxu0 0.0
  %962 = vmatprep.subr.mxu0 0.0
  %963 = vmatpush1.msra.mxu0 0.0
  %964 = vmatprep.subr.mxu0 0.0
  %965 = vmatpush1.msra.mxu0 0.0
  %966 = vmatprep.subr.mxu0 0.0
  %967 = vmatpush1.msra.mxu0 0.0
  %968 = vmatprep.subr.mxu0 0.0
  %969 = vmatpush1.msra.mxu0 0.0
  %970 = vmatprep.subr.mxu0 0.0
  %971 = vmatpush1.msra.mxu0 0.0
  %972 = vmatprep.mubr.f32.mxu0 0.0
  %973 = vmatmul.mubr.f32.gmra.mrb[0].mxu0 %v906
  %v974 = vpop.f32.mrb[0].mxu0
  %v975 = vadd.f32 0.0, %v974
  %v976 = vpop.f32.mrb[0].mxu0
  %977 = vdwg.mxu0
  %v978 = vadd.f32 %v166, %v975
  %v979 = vxor.u32 %v978, 2147483648
  %v980 = vmul.f32 %v979, 1.442695
  %v981 = vpow.pop %v980
  %v982 = vadd.f32 %v981, 1.0
  %v983 = vrcp.pop %v982
  %v984 = vmul.f32 1.0, %v983
  %v985 = vmul.f32 %v984, 2.0
  %v986 = vsub.f32 %v985, 1.0
  %v987 = vmul.f32 %v984, %v902
  %989 = vrot.lane.b32.xlu0 %v986, 64
  %v990 = vpop.permute.xlu0 %989
  %v992 = vmul.f32 %v984, %v990
  %994 = vrot.lane.b32.xlu0 %v992, 32
  %v995 = vpop.permute.xlu0 %994
  %v997 = vadd.f32 %v987, %v995
  %v998 = vtanh.pop %v997
  %1000 = vrot.lane.b32.xlu0 %v998, 64
  %v1001 = vpop.permute.xlu0 %1000
  %v1003 = vmul.f32 %v984, %v1001
  %vm1004 = vcmp.gt.s32.totalorder %v172, 7
  %v1005 = vsel %vm1004, %v1003, %v901
  %1007 = vrot.lane.b32.xlu0 %v1005, 32
  %v1008 = vpop.permute.xlu0 %1007
  %1010 = vst.msk [vmem:[%s5] sm:$0xff] %vm39, %v1008
  // Predicated region
  $region22: #{lstm_pallas.1} parent=0 // pred_check
    _
  $region23: #{lstm_pallas.1} parent=0 // pred_check_branch
    %1012 = sbr.rel (0) target = $region25
  $region24: #{lstm_pallas.1} parent=0 // pred_region
    _
  $region25: #{lstm_pallas.1} parent=0 // pred_fallthru
    _
  // Predicated region
  $region26: #{lstm_pallas.1} parent=0 // pred_check
    _
  $region27: #{lstm_pallas.1} parent=0 // pred_check_branch
    %1014 = sbr.rel (0) target = $region29
  $region28: #{lstm_pallas.1} parent=0 // pred_region
    _
  $region29: #{lstm_pallas.1} parent=0 // pred_fallthru
    _

</llo_original>
